<compile_context>
chip_gen: v7x
topology: tpu7x:2x2x1
jax: 0.10.0
libtpu: 0.0.40
codegen_flags: <defaults>
</compile_context>

<pallas_src>
import math
from functools import partial

import jax
import jax.numpy as jnp
from jax.experimental import pallas as pl
from jax.experimental.pallas import tpu as pltpu


def _round_up(n, m):
    return ((n + m - 1) // m) * m


def _pad2d(a, rows, cols):
    pr, pc = rows - a.shape[0], cols - a.shape[1]
    if pr or pc:
        a = jnp.pad(a, ((0, pr), (0, pc)))
    return a


def _make_mlp_kernel(num_layers):
    """Fused MLP kernel. refs = [x_tile, w0, b0, w1, b1, ..., out_tile]."""

    def kernel(*refs):
        x_ref, o_ref = refs[0], refs[-1]
        wb = refs[1:-1]
        h = x_ref[...].astype(jnp.float32)
        for n in range(num_layers):
            w = wb[2 * n][...].astype(jnp.float32)
            b = wb[2 * n + 1][...].astype(jnp.float32)
            h = jnp.dot(h, w, preferred_element_type=jnp.float32) + b
            if n < num_layers - 1:
                # SiLU: x * sigmoid(x).  exp lowers to the EUP slot (free filler
                # while the kernel is MXU / memory bound).
                h = h * (1.0 / (1.0 + jnp.exp(-h)))
        o_ref[...] = h.astype(o_ref.dtype)

    return kernel


def _pick_tile_b(B, widths, weight_bytes, itemsize=4, vmem_budget=32 * 1024 * 1024):
    """Largest batch tile (multiple of 8) such that the double-buffered in/out
    stream + fp32 activations fit the VMEM budget after reserving room for the
    (double-buffered) resident weights."""
    budget = max(vmem_budget - 2 * weight_bytes, 4 * 1024 * 1024)
    # in/out tiles double-buffered + widest fp32 activation held in the body.
    per_row = 2 * (widths[0] + widths[-1]) * itemsize + 4 * max(widths)
    tile = max(8, (budget // max(per_row, 1)) // 8 * 8)
    tile = min(tile, 1024)                 # keep several grid steps for big B
    tile = min(tile, _round_up(B, 8))
    return tile


@partial(jax.jit, static_argnames=("d_out",))
def _subnet_forward_pallas(inp, weights_p, biases_p, d_out):
    """inp: (B, D_in) unpadded.  weights_p[n]: padded (in_p, out_p); biases_p[n]: (1, out_p)."""
    num_layers = len(weights_p)
    B, d_in = inp.shape
    d_in_p = weights_p[0].shape[0]
    d_out_p = weights_p[-1].shape[1]

    widths = [d_in_p] + [w.shape[1] for w in weights_p]
    weight_bytes = sum(w.size * w.dtype.itemsize for w in weights_p)
    tile_b = _pick_tile_b(B, widths, weight_bytes, inp.dtype.itemsize)
    B_p = _round_up(B, tile_b)

    # Pad activations only (weights were padded once at construction).
    x_p = _pad2d(inp, B_p, d_in_p)

    grid = (B_p // tile_b,)
    in_specs = [pl.BlockSpec((tile_b, d_in_p), lambda i: (i, 0))]
    flat_wb = []
    for w, b in zip(weights_p, biases_p):
        in_specs.append(pl.BlockSpec(w.shape, lambda i: (0, 0)))   # VMEM-resident
        in_specs.append(pl.BlockSpec(b.shape, lambda i: (0, 0)))
        flat_wb += [w, b]
    out_specs = pl.BlockSpec((tile_b, d_out_p), lambda i: (i, 0))

    out_p = pl.pallas_call(
        _make_mlp_kernel(num_layers),
        out_shape=jax.ShapeDtypeStruct((B_p, d_out_p), inp.dtype),
        grid_spec=pltpu.PrefetchScalarGridSpec(
            num_scalar_prefetch=0,
            grid=grid,
            in_specs=in_specs,
            out_specs=out_specs),
        compiler_params=pltpu.CompilerParams(
            # Batch tiles are independent -> shard across both TCs on v7x.
            dimension_semantics=("parallel",),
            # Above the 16/32 MiB scoped defaults, below v7x's 64 MiB physical.
            vmem_limit_bytes=48 * 1024 * 1024),
    )(x_p, *flat_wb)

    return out_p[:B, :d_out]


class Subnet:
    """JAX/Pallas port of the PyTorch Subnet (standard, non-bayesian MLP path).

    TODO(synk): VBLinear (bayesian) sampling, training-mode dropout and the
    residual_linear option are not ported; this implements the default config
    (plain nn.Linear layers + SiLU activations, dropout=0).
    """

    def __init__(self, params, conditional=True, *, key=None, dtype=jnp.float32):
        network_params = params.get('network_params', {})
        embed_x_dim = network_params.get('embed_x_dim', params['dims_in'])
        embed_c_dim = network_params.get('embed_c_dim', params['dims_c'])
        embed_t_dim = network_params.get('embed_t_dim', 1)
        final_output_dim = network_params.get('final_output_dim', None)
        if final_output_dim is None:
            final_output_dim = params['dims_in']
        if params.get('give_x1'):
            embed_t_dim = embed_x_dim
        self.conditional = conditional
        if not conditional:
            embed_c_dim = 0
        num_layers = network_params.get('layers_per_block', 3)
        internal_size = network_params.get('internal_size', 3)

        if key is None:
            key = jax.random.PRNGKey(0)

        # Mirror the PyTorch if/elif exactly (incl. num_layers == 1 corner case).
        dims = []
        for n in range(num_layers):
            in_dim, out_dim = internal_size, internal_size
            if n == 0:
                in_dim = embed_t_dim + embed_x_dim + embed_c_dim
            elif n == num_layers - 1:
                out_dim = final_output_dim
            dims.append((in_dim, out_dim))

        ws, bs = [], []
        for n, (di, do) in enumerate(dims):
            key, kw, kb = jax.random.split(key, 3)
            stdv = 1.0 / math.sqrt(di)
            # Weights stored already transposed to (in, out) for x @ W.
            w = jax.random.uniform(kw, (di, do), dtype, -stdv, stdv)
            b = jax.random.uniform(kb, (do,), dtype, -stdv, stdv)
            if n == num_layers - 1:
                # PyTorch reference scales the last layer's params by 0.02 at init.
                w = w * 0.02
                b = b * 0.02
            ws.append(w)
            bs.append(b)
        self.weights = tuple(ws)
        self.biases = tuple(bs)
        self.d_in = dims[0][0]
        self.d_out = dims[-1][1]

        # Pre-pad params to lane-dense (x128) shapes ONCE; the per-call jitted
        # path then only pads/slices activations.
        ws_p, bs_p = [], []
        prev_p = _round_up(self.d_in, 128)
        for w, b in zip(ws, bs):
            cur_p = _round_up(w.shape[1], 128)
            ws_p.append(_pad2d(w, prev_p, cur_p))
            bs_p.append(_pad2d(b.reshape(1, -1), 1, cur_p))
            prev_p = cur_p
        self.weights_p = tuple(jax.device_put(w) for w in ws_p)
        self.biases_p = tuple(jax.device_put(b) for b in bs_p)

    def __call__(self, t, x, c=None):
        if self.conditional:
            inp = jnp.concatenate([t, x, c], axis=-1)
        else:
            inp = jnp.concatenate([t, x], axis=-1)
        return _subnet_forward_pallas(inp, self.weights_p, self.biases_p, self.d_out)


if __name__ == "__main__":
    key = jax.random.PRNGKey(0)
    kt, kx, kc, kp = jax.random.split(key, 4)

    B = 2
    dims_in, dims_c = 32, 16
    params = {
        'dims_in': dims_in,
        'dims_c': dims_c,
        'network_params': {'layers_per_block': 3, 'internal_size': 64},
    }
    net = Subnet(params, conditional=True, key=kp)

    t = jax.random.uniform(kt, (B, 1), dtype=jnp.float32)
    x = jax.random.normal(kx, (B, dims_in), dtype=jnp.float32)
    c = jax.random.normal(kc, (B, dims_c), dtype=jnp.float32)

    out = net(t, x, c)
    jax.block_until_ready(out)

    # Pure-JAX reference (same math as the PyTorch Subnet forward, default cfg).
    def ref_forward(t, x, c, ws, bs):
        h = jnp.concatenate([t, x, c], axis=-1)
        for n, (w, b) in enumerate(zip(ws, bs)):
            h = h @ w + b
            if n < len(ws) - 1:
                h = h * (1.0 / (1.0 + jnp.exp(-h)))
        return h

    ref = ref_forward(t, x, c, net.weights, net.biases)
    assert out.shape == (B, dims_in), out.shape
    assert jnp.allclose(out, ref, atol=1e-5, rtol=1e-5), \
        float(jnp.max(jnp.abs(out - ref)))

    print("KERNEL_OK")
</pallas_src>

<mosaic_0001>
module attributes {stable_mosaic.version = 11 : i64} {
  func.func @kernel(%arg0: i32, %arg1: memref<8x128xf32, #tpu.memory_space<vmem>>, %arg2: memref<128x128xf32, #tpu.memory_space<vmem>>, %arg3: memref<1x128xf32, #tpu.memory_space<vmem>>, %arg4: memref<128x128xf32, #tpu.memory_space<vmem>>, %arg5: memref<1x128xf32, #tpu.memory_space<vmem>>, %arg6: memref<128x128xf32, #tpu.memory_space<vmem>>, %arg7: memref<1x128xf32, #tpu.memory_space<vmem>>, %arg8: memref<8x128xf32, #tpu.memory_space<vmem>>) attributes {dimension_semantics = [#tpu.dimension_semantics<parallel>], iteration_bounds = array<i64: 1>, scalar_prefetch = 0 : i64, scratch_operands = 0 : i64, tpu.core_type = #tpu.core_type<tc>, window_params = [{transform_indices = @transform_0, window_bounds = array<i64: 8, 128>}, {pipeline_mode = #tpu.pipeline_mode<synchronous>, transform_indices = @transform_1, window_bounds = array<i64: 128, 128>}, {pipeline_mode = #tpu.pipeline_mode<synchronous>, transform_indices = @transform_2, window_bounds = array<i64: 1, 128>}, {pipeline_mode = #tpu.pipeline_mode<synchronous>, transform_indices = @transform_3, window_bounds = array<i64: 128, 128>}, {pipeline_mode = #tpu.pipeline_mode<synchronous>, transform_indices = @transform_4, window_bounds = array<i64: 1, 128>}, {pipeline_mode = #tpu.pipeline_mode<synchronous>, transform_indices = @transform_5, window_bounds = array<i64: 128, 128>}, {pipeline_mode = #tpu.pipeline_mode<synchronous>, transform_indices = @transform_6, window_bounds = array<i64: 1, 128>}, {transform_indices = @transform_7, window_bounds = array<i64: 8, 128>}]} {
    %c0 = arith.constant 0 : index
    %c0_0 = arith.constant 0 : index
    %0 = vector.load %arg1[%c0, %c0_0] : memref<8x128xf32, #tpu.memory_space<vmem>>, vector<8x128xf32>
    %c0_1 = arith.constant 0 : index
    %c0_2 = arith.constant 0 : index
    %1 = vector.load %arg2[%c0_1, %c0_2] : memref<128x128xf32, #tpu.memory_space<vmem>>, vector<128x128xf32>
    %c0_3 = arith.constant 0 : index
    %c0_4 = arith.constant 0 : index
    %2 = vector.load %arg3[%c0_3, %c0_4] : memref<1x128xf32, #tpu.memory_space<vmem>>, vector<1x128xf32>
    %cst = arith.constant dense<0.000000e+00> : vector<8x128xf32>
    %3 = tpu.matmul %0, %1, %cst {dimension_numbers = #tpu.dot_dimension_numbers<[1], [0], [0], [1], [0, 0, 1, 1], [], []>} : vector<8x128xf32>, vector<128x128xf32>, vector<8x128xf32> -> vector<8x128xf32>
    %4 = vector.broadcast %2 : vector<1x128xf32> to vector<8x128xf32>
    %5 = arith.addf %3, %4 : vector<8x128xf32>
    %cst_5 = arith.constant 0.000000e+00 : f32
    %6 = vector.broadcast %cst_5 : f32 to vector<8x128xf32>
    %7 = arith.subf %6, %5 : vector<8x128xf32>
    %8 = math.exp %7 : vector<8x128xf32>
    %cst_6 = arith.constant 1.000000e+00 : f32
    %9 = vector.broadcast %cst_6 : f32 to vector<8x128xf32>
    %10 = arith.addf %9, %8 : vector<8x128xf32>
    %cst_7 = arith.constant 1.000000e+00 : f32
    %11 = vector.broadcast %cst_7 : f32 to vector<8x128xf32>
    %12 = arith.divf %11, %10 : vector<8x128xf32>
    %13 = arith.mulf %5, %12 : vector<8x128xf32>
    %c0_8 = arith.constant 0 : index
    %c0_9 = arith.constant 0 : index
    %14 = vector.load %arg4[%c0_8, %c0_9] : memref<128x128xf32, #tpu.memory_space<vmem>>, vector<128x128xf32>
    %c0_10 = arith.constant 0 : index
    %c0_11 = arith.constant 0 : index
    %15 = vector.load %arg5[%c0_10, %c0_11] : memref<1x128xf32, #tpu.memory_space<vmem>>, vector<1x128xf32>
    %cst_12 = arith.constant dense<0.000000e+00> : vector<8x128xf32>
    %16 = tpu.matmul %13, %14, %cst_12 {dimension_numbers = #tpu.dot_dimension_numbers<[1], [0], [0], [1], [0, 0, 1, 1], [], []>} : vector<8x128xf32>, vector<128x128xf32>, vector<8x128xf32> -> vector<8x128xf32>
    %17 = vector.broadcast %15 : vector<1x128xf32> to vector<8x128xf32>
    %18 = arith.addf %16, %17 : vector<8x128xf32>
    %cst_13 = arith.constant 0.000000e+00 : f32
    %19 = vector.broadcast %cst_13 : f32 to vector<8x128xf32>
    %20 = arith.subf %19, %18 : vector<8x128xf32>
    %21 = math.exp %20 : vector<8x128xf32>
    %cst_14 = arith.constant 1.000000e+00 : f32
    %22 = vector.broadcast %cst_14 : f32 to vector<8x128xf32>
    %23 = arith.addf %22, %21 : vector<8x128xf32>
    %cst_15 = arith.constant 1.000000e+00 : f32
    %24 = vector.broadcast %cst_15 : f32 to vector<8x128xf32>
    %25 = arith.divf %24, %23 : vector<8x128xf32>
    %26 = arith.mulf %18, %25 : vector<8x128xf32>
    %c0_16 = arith.constant 0 : index
    %c0_17 = arith.constant 0 : index
    %27 = vector.load %arg6[%c0_16, %c0_17] : memref<128x128xf32, #tpu.memory_space<vmem>>, vector<128x128xf32>
    %c0_18 = arith.constant 0 : index
    %c0_19 = arith.constant 0 : index
    %28 = vector.load %arg7[%c0_18, %c0_19] : memref<1x128xf32, #tpu.memory_space<vmem>>, vector<1x128xf32>
    %cst_20 = arith.constant dense<0.000000e+00> : vector<8x128xf32>
    %29 = tpu.matmul %26, %27, %cst_20 {dimension_numbers = #tpu.dot_dimension_numbers<[1], [0], [0], [1], [0, 0, 1, 1], [], []>} : vector<8x128xf32>, vector<128x128xf32>, vector<8x128xf32> -> vector<8x128xf32>
    %30 = vector.broadcast %28 : vector<1x128xf32> to vector<8x128xf32>
    %31 = arith.addf %29, %30 : vector<8x128xf32>
    %c0_21 = arith.constant 0 : index
    %c0_22 = arith.constant 0 : index
    %32 = vector.load %arg8[%c0_21, %c0_22] : memref<8x128xf32, #tpu.memory_space<vmem>>, vector<8x128xf32>
    tpu.vector_store %arg8[%c0_21, %c0_22], %31 {strides = array<i32>} : memref<8x128xf32, #tpu.memory_space<vmem>>, vector<8x128xf32>,
    return
  }
  func.func @transform_0(%arg0: i32) -> (i32, i32) {
    %c0_i32 = arith.constant 0 : i32
    %c0_i32_0 = arith.constant 0 : i32
    return %arg0, %c0_i32 : i32, i32
  }
  func.func @transform_1(%arg0: i32) -> (i32, i32) {
    %c0_i32 = arith.constant 0 : i32
    %c0_i32_0 = arith.constant 0 : i32
    %c0_i32_1 = arith.constant 0 : i32
    return %c0_i32, %c0_i32_0 : i32, i32
  }
  func.func @transform_2(%arg0: i32) -> (i32, i32) {
    %c0_i32 = arith.constant 0 : i32
    %c0_i32_0 = arith.constant 0 : i32
    %c0_i32_1 = arith.constant 0 : i32
    return %c0_i32, %c0_i32_0 : i32, i32
  }
  func.func @transform_3(%arg0: i32) -> (i32, i32) {
    %c0_i32 = arith.constant 0 : i32
    %c0_i32_0 = arith.constant 0 : i32
    %c0_i32_1 = arith.constant 0 : i32
    return %c0_i32, %c0_i32_0 : i32, i32
  }
  func.func @transform_4(%arg0: i32) -> (i32, i32) {
    %c0_i32 = arith.constant 0 : i32
    %c0_i32_0 = arith.constant 0 : i32
    %c0_i32_1 = arith.constant 0 : i32
    return %c0_i32, %c0_i32_0 : i32, i32
  }
  func.func @transform_5(%arg0: i32) -> (i32, i32) {
    %c0_i32 = arith.constant 0 : i32
    %c0_i32_0 = arith.constant 0 : i32
    %c0_i32_1 = arith.constant 0 : i32
    return %c0_i32, %c0_i32_0 : i32, i32
  }
  func.func @transform_6(%arg0: i32) -> (i32, i32) {
    %c0_i32 = arith.constant 0 : i32
    %c0_i32_0 = arith.constant 0 : i32
    %c0_i32_1 = arith.constant 0 : i32
    return %c0_i32, %c0_i32_0 : i32, i32
  }
  func.func @transform_7(%arg0: i32) -> (i32, i32) {
    %c0_i32 = arith.constant 0 : i32
    %c0_i32_0 = arith.constant 0 : i32
    return %arg0, %c0_i32 : i32, i32
  }
}

</mosaic_0001>

<llo_original>
// kernel: _subnet_forward_pallas.1
$region0: #{_subnet_forward_pallas.1}
  #allocation0 [shape = 'u32[]', space=smem, size = 0x4, offset = 0x4, fixed_abs, tag = 'smem constant byte address 0x4 - core index']
  #allocation1 [shape = 'u32[144,128]{1,0:T(1,128)}', space=vmem, size = 0x12000, scoped, tag = 'internal scratch']
  %s0 = inlined_call_operand.vmem [shape: f32[8,128], index: 0, kind: input, shape index: {}]
  %s1 = inlined_call_operand.hbm [shape: f32[128,128], index: 1, kind: input, shape index: {}]
  %s2 = inlined_call_operand.vmem [shape: f32[1,128], index: 2, kind: input, shape index: {}]
  %s3 = inlined_call_operand.hbm [shape: f32[128,128], index: 3, kind: input, shape index: {}]
  %s4 = inlined_call_operand.vmem [shape: f32[1,128], index: 4, kind: input, shape index: {}]
  %s5 = inlined_call_operand.hbm [shape: f32[128,128], index: 5, kind: input, shape index: {}]
  %s6 = inlined_call_operand.vmem [shape: f32[1,128], index: 6, kind: input, shape index: {}]
  %s7 = inlined_call_operand.vmem [shape: f32[8,128], index: 7, kind: output, shape index: {}]
  %s8 = sld [smem:[#allocation0]]
  $region50: #{_subnet_forward_pallas.1} parent=0
    _
  %s10 = ssub.s32 1, %s8
  %s11 = scalar_select 0, %s10, %s8
  $region1: #{_subnet_forward_pallas.1} parent=0
    #allocation2 [shape = 'u8[65536]{0}', space=vmem, size = 0x10000, scoped, tag = 'input window, operand 1, single buffered']
    #allocation3 [shape = 's32[1]{0}', space=sflag, size = 0x4, scoped, tag = 'scoped memory for _subnet_forward_pallas.1']
    #allocation4 [shape = 'u8[65536]{0}', space=vmem, size = 0x10000, scoped, tag = 'input window, operand 3, single buffered']
    #allocation5 [shape = 's32[1]{0}', space=sflag, size = 0x4, scoped, tag = 'scoped memory for _subnet_forward_pallas.1']
    #allocation6 [shape = 'u8[65536]{0}', space=vmem, size = 0x10000, scoped, tag = 'input window, operand 5, single buffered']
    %12 = vsyncpa [#allocation3], 0
    %13 = vsyncpa [#allocation5], 0
    // Predicated region
    $region2: #{_subnet_forward_pallas.1} parent=1 // pred_check
      _
    $region3: #{_subnet_forward_pallas.1} parent=1 // pred_check_branch
      %15 = sbr.rel (0) target = $region5
    $region4: #{_subnet_forward_pallas.1} parent=1 // pred_region
      _
    $region5: #{_subnet_forward_pallas.1} parent=1 // pred_fallthru
      _
    // Predicated region
    $region6: #{_subnet_forward_pallas.1} parent=1 // pred_check
      _
    $region7: #{_subnet_forward_pallas.1} parent=1 // pred_check_branch
      %17 = sbr.rel (0) target = $region9
    $region8: #{_subnet_forward_pallas.1} parent=1 // pred_region
      %s19 = ssub.s32 2048, 2048
      %20 = vsyncadd [#allocation3], %s19
      %s21 = sshll.u32 [#allocation2], 4
      %s22 = int_to_ptr.vmem [resolvable:$true] %s21
      %27 = dma.hbm_to_vmem [thread:$0]  %s1, 2048, %s22, [#allocation3], 128, 128, 8
    $region9: #{_subnet_forward_pallas.1} parent=1 // pred_fallthru
      _
    // Predicated region
    $region10: #{_subnet_forward_pallas.1} parent=1 // pred_check
      _
    $region11: #{_subnet_forward_pallas.1} parent=1 // pred_check_branch
      %29 = sbr.rel (0) target = $region13
    $region12: #{_subnet_forward_pallas.1} parent=1 // pred_region
      _
    $region13: #{_subnet_forward_pallas.1} parent=1 // pred_fallthru
      _
    // Predicated region
    $region14: #{_subnet_forward_pallas.1} parent=1 // pred_check
      _
    $region15: #{_subnet_forward_pallas.1} parent=1 // pred_check_branch
      %31 = sbr.rel (0) target = $region17
    $region16: #{_subnet_forward_pallas.1} parent=1 // pred_region
      %s33 = ssub.s32 2048, 2048
      %34 = vsyncadd [#allocation5], %s33
      %s35 = sshll.u32 [#allocation4], 4
      %s36 = int_to_ptr.vmem [resolvable:$true] %s35
      %41 = dma.hbm_to_vmem [thread:$0]  %s3, 2048, %s36, [#allocation5], 128, 128, 8
    $region17: #{_subnet_forward_pallas.1} parent=1 // pred_fallthru
      _
    // Predicated region
    $region18: #{_subnet_forward_pallas.1} parent=1 // pred_check
      _
    $region19: #{_subnet_forward_pallas.1} parent=1 // pred_check_branch
      %43 = sbr.rel (0) target = $region21
    $region20: #{_subnet_forward_pallas.1} parent=1 // pred_region
      _
    $region21: #{_subnet_forward_pallas.1} parent=1 // pred_fallthru
      _
    // Predicated region
    $region22: #{_subnet_forward_pallas.1} parent=1 // pred_check
      _
    $region23: #{_subnet_forward_pallas.1} parent=1 // pred_check_branch
      %45 = sbr.rel (0) target = $region25
    $region24: #{_subnet_forward_pallas.1} parent=1 // pred_region
      %s47 = ssub.s32 2048, 2048
      %48 = vsyncadd [#allocation5], %s47
      %s49 = sshll.u32 [#allocation6], 4
      %s50 = int_to_ptr.vmem [resolvable:$true] %s49
      %55 = dma.hbm_to_vmem [thread:$0]  %s5, 2048, %s50, [#allocation5], 128, 128, 8
    $region25: #{_subnet_forward_pallas.1} parent=1 // pred_fallthru
      _
    // Predicated region
    $region26: #{_subnet_forward_pallas.1} parent=1 // pred_check
      _
    $region27: #{_subnet_forward_pallas.1} parent=1 // pred_check_branch
      %57 = sbr.rel (0) target = $region29
    $region28: #{_subnet_forward_pallas.1} parent=1 // pred_region
      _
    $region29: #{_subnet_forward_pallas.1} parent=1 // pred_fallthru
      _
    // Predicated region
    $region30: #{_subnet_forward_pallas.1} parent=1 // pred_check
      _
    $region31: #{_subnet_forward_pallas.1} parent=1 // pred_check_branch
      %59 = sbr.rel (0) target = $region33
    $region32: #{_subnet_forward_pallas.1} parent=1 // pred_region
      %60 = dma.done [#allocation3], 2048
    $region33: #{_subnet_forward_pallas.1} parent=1 // pred_fallthru
      _
    // Predicated region
    $region34: #{_subnet_forward_pallas.1} parent=1 // pred_check
      _
    $region35: #{_subnet_forward_pallas.1} parent=1 // pred_check_branch
      %62 = sbr.rel (0) target = $region37
    $region36: #{_subnet_forward_pallas.1} parent=1 // pred_region
      %63 = dma.done [#allocation5], 2048
    $region37: #{_subnet_forward_pallas.1} parent=1 // pred_fallthru
      _
    // Predicated region
    $region38: #{_subnet_forward_pallas.1} parent=1 // pred_check
      _
    $region39: #{_subnet_forward_pallas.1} parent=1 // pred_check_branch
      %65 = sbr.rel (0) target = $region41
    $region40: #{_subnet_forward_pallas.1} parent=1 // pred_region
      %66 = dma.done [#allocation5], 2048
    $region41: #{_subnet_forward_pallas.1} parent=1 // pred_fallthru
      _
    %v67 = vld [vmem:[%s0] sm:$0xff]
    %v68 = vld [vmem:[#allocation2] sm:$0xff]
    %v69 = vld [vmem:[#allocation2 + $0x8] sm:$0xff]
    %v70 = vld [vmem:[#allocation2 + $0x10] sm:$0xff]
    %v71 = vld [vmem:[#allocation2 + $0x18] sm:$0xff]
    %v72 = vld [vmem:[#allocation2 + $0x20] sm:$0xff]
    %v73 = vld [vmem:[#allocation2 + $0x28] sm:$0xff]
    %v74 = vld [vmem:[#allocation2 + $0x30] sm:$0xff]
    %v75 = vld [vmem:[#allocation2 + $0x38] sm:$0xff]
    %v76 = vld [vmem:[#allocation2 + $0x40] sm:$0xff]
    %v77 = vld [vmem:[#allocation2 + $0x48] sm:$0xff]
    %v78 = vld [vmem:[#allocation2 + $0x50] sm:$0xff]
    %v79 = vld [vmem:[#allocation2 + $0x58] sm:$0xff]
    %v80 = vld [vmem:[#allocation2 + $0x60] sm:$0xff]
    %v81 = vld [vmem:[#allocation2 + $0x68] sm:$0xff]
    %v82 = vld [vmem:[#allocation2 + $0x70] sm:$0xff]
    %v83 = vld [vmem:[#allocation2 + $0x78] sm:$0xff]
    %v84 = vld [vmem:[%s2] sm:$0x1]
    %v86 = vlaneseq
    %v87 = vshrl.u32 %v86, 7
    %v88 = vsub.s32 0, %v87
    %v89 = vrot.slane %v84, %v88
    %91 = vmatprep.subr.mxu0 0.0
    %92 = vmatpush1.msra.mxu0 %v68
    %93 = vmatprep.subr.mxu0 0.0
    %94 = vmatpush1.msra.mxu0 %v69
    %95 = vmatprep.subr.mxu0 0.0
    %96 = vmatpush1.msra.mxu0 %v70
    %97 = vmatprep.subr.mxu0 0.0
    %98 = vmatpush1.msra.mxu0 %v71
    %99 = vmatprep.subr.mxu0 0.0
    %100 = vmatpush1.msra.mxu0 %v72
    %101 = vmatprep.subr.mxu0 0.0
    %102 = vmatpush1.msra.mxu0 %v73
    %103 = vmatprep.subr.mxu0 0.0
    %104 = vmatpush1.msra.mxu0 %v74
    %105 = vmatprep.subr.mxu0 0.0
    %106 = vmatpush1.msra.mxu0 %v75
    %107 = vmatprep.subr.mxu0 0.0
    %108 = vmatpush1.msra.mxu0 %v76
    %109 = vmatprep.subr.mxu0 0.0
    %110 = vmatpush1.msra.mxu0 %v77
    %111 = vmatprep.subr.mxu0 0.0
    %112 = vmatpush1.msra.mxu0 %v78
    %113 = vmatprep.subr.mxu0 0.0
    %114 = vmatpush1.msra.mxu0 %v79
    %115 = vmatprep.subr.mxu0 0.0
    %116 = vmatpush1.msra.mxu0 %v80
    %117 = vmatprep.subr.mxu0 0.0
    %118 = vmatpush1.msra.mxu0 %v81
    %119 = vmatprep.subr.mxu0 0.0
    %120 = vmatpush1.msra.mxu0 %v82
    %121 = vmatprep.subr.mxu0 0.0
    %122 = vmatpush1.msra.mxu0 %v83
    %123 = vmatprep.subr.mxu0 0.0
    %124 = vmatpush1.msra.mxu0 0.0
    %125 = vmatprep.subr.mxu0 0.0
    %126 = vmatpush1.msra.mxu0 0.0
    %127 = vmatprep.subr.mxu0 0.0
    %128 = vmatpush1.msra.mxu0 0.0
    %129 = vmatprep.subr.mxu0 0.0
    %130 = vmatpush1.msra.mxu0 0.0
    %131 = vmatprep.subr.mxu0 0.0
    %132 = vmatpush1.msra.mxu0 0.0
    %133 = vmatprep.subr.mxu0 0.0
    %134 = vmatpush1.msra.mxu0 0.0
    %135 = vmatprep.subr.mxu0 0.0
    %136 = vmatpush1.msra.mxu0 0.0
    %137 = vmatprep.subr.mxu0 0.0
    %138 = vmatpush1.msra.mxu0 0.0
    %139 = vmatprep.subr.mxu0 0.0
    %140 = vmatpush1.msra.mxu0 0.0
    %141 = vmatprep.subr.mxu0 0.0
    %142 = vmatpush1.msra.mxu0 0.0
    %143 = vmatprep.subr.mxu0 0.0
    %144 = vmatpush1.msra.mxu0 0.0
    %145 = vmatprep.subr.mxu0 0.0
    %146 = vmatpush1.msra.mxu0 0.0
    %147 = vmatprep.subr.mxu0 0.0
    %148 = vmatpush1.msra.mxu0 0.0
    %149 = vmatprep.subr.mxu0 0.0
    %150 = vmatpush1.msra.mxu0 0.0
    %151 = vmatprep.subr.mxu0 0.0
    %152 = vmatpush1.msra.mxu0 0.0
    %153 = vmatprep.subr.mxu0 0.0
    %154 = vmatpush1.msra.mxu0 0.0
    %155 = vmatprep.mubr.f32.mxu0 0.0
    %156 = vmatmul.mubr.f32.gmra.mrb[0].mxu0 %v67
    %v157 = vpop.f32.mrb[0].mxu0
    %v158 = vadd.f32 %v89, %v157
    %v159 = vpop.f32.mrb[0].mxu0
    %160 = vdwg.mxu0
    %v161 = vsub.f32 0.0, %v158
    %v162 = vmul.f32 %v161, 1.442695
    %v163 = vpow.pop %v162
    %v164 = vadd.f32 %v163, 1.0
    %v165 = vrcp.pop %v164
    %v166 = vmul.f32 1.0, %v165
    %v167 = vmul.f32 %v158, %v166
    %v168 = vld [vmem:[#allocation4] sm:$0xff]
    %v169 = vld [vmem:[#allocation4 + $0x8] sm:$0xff]
    %v170 = vld [vmem:[#allocation4 + $0x10] sm:$0xff]
    %v171 = vld [vmem:[#allocation4 + $0x18] sm:$0xff]
    %v172 = vld [vmem:[#allocation4 + $0x20] sm:$0xff]
    %v173 = vld [vmem:[#allocation4 + $0x28] sm:$0xff]
    %v174 = vld [vmem:[#allocation4 + $0x30] sm:$0xff]
    %v175 = vld [vmem:[#allocation4 + $0x38] sm:$0xff]
    %v176 = vld [vmem:[#allocation4 + $0x40] sm:$0xff]
    %v177 = vld [vmem:[#allocation4 + $0x48] sm:$0xff]
    %v178 = vld [vmem:[#allocation4 + $0x50] sm:$0xff]
    %v179 = vld [vmem:[#allocation4 + $0x58] sm:$0xff]
    %v180 = vld [vmem:[#allocation4 + $0x60] sm:$0xff]
    %v181 = vld [vmem:[#allocation4 + $0x68] sm:$0xff]
    %v182 = vld [vmem:[#allocation4 + $0x70] sm:$0xff]
    %v183 = vld [vmem:[#allocation4 + $0x78] sm:$0xff]
    %v184 = vld [vmem:[%s4] sm:$0x1]
    %v186 = vlaneseq
    %v187 = vshrl.u32 %v186, 7
    %v188 = vsub.s32 0, %v187
    %v189 = vrot.slane %v184, %v188
    %191 = vmatprep.subr.mxu0 0.0
    %192 = vmatpush1.msra.mxu0 %v168
    %193 = vmatprep.subr.mxu0 0.0
    %194 = vmatpush1.msra.mxu0 %v169
    %195 = vmatprep.subr.mxu0 0.0
    %196 = vmatpush1.msra.mxu0 %v170
    %197 = vmatprep.subr.mxu0 0.0
    %198 = vmatpush1.msra.mxu0 %v171
    %199 = vmatprep.subr.mxu0 0.0
    %200 = vmatpush1.msra.mxu0 %v172
    %201 = vmatprep.subr.mxu0 0.0
    %202 = vmatpush1.msra.mxu0 %v173
    %203 = vmatprep.subr.mxu0 0.0
    %204 = vmatpush1.msra.mxu0 %v174
    %205 = vmatprep.subr.mxu0 0.0
    %206 = vmatpush1.msra.mxu0 %v175
    %207 = vmatprep.subr.mxu0 0.0
    %208 = vmatpush1.msra.mxu0 %v176
    %209 = vmatprep.subr.mxu0 0.0
    %210 = vmatpush1.msra.mxu0 %v177
    %211 = vmatprep.subr.mxu0 0.0
    %212 = vmatpush1.msra.mxu0 %v178
    %213 = vmatprep.subr.mxu0 0.0
    %214 = vmatpush1.msra.mxu0 %v179
    %215 = vmatprep.subr.mxu0 0.0
    %216 = vmatpush1.msra.mxu0 %v180
    %217 = vmatprep.subr.mxu0 0.0
    %218 = vmatpush1.msra.mxu0 %v181
    %219 = vmatprep.subr.mxu0 0.0
    %220 = vmatpush1.msra.mxu0 %v182
    %221 = vmatprep.subr.mxu0 0.0
    %222 = vmatpush1.msra.mxu0 %v183
    %223 = vmatprep.subr.mxu0 0.0
    %224 = vmatpush1.msra.mxu0 0.0
    %225 = vmatprep.subr.mxu0 0.0
    %226 = vmatpush1.msra.mxu0 0.0
    %227 = vmatprep.subr.mxu0 0.0
    %228 = vmatpush1.msra.mxu0 0.0
    %229 = vmatprep.subr.mxu0 0.0
    %230 = vmatpush1.msra.mxu0 0.0
    %231 = vmatprep.subr.mxu0 0.0
    %232 = vmatpush1.msra.mxu0 0.0
    %233 = vmatprep.subr.mxu0 0.0
    %234 = vmatpush1.msra.mxu0 0.0
    %235 = vmatprep.subr.mxu0 0.0
    %236 = vmatpush1.msra.mxu0 0.0
    %237 = vmatprep.subr.mxu0 0.0
    %238 = vmatpush1.msra.mxu0 0.0
    %239 = vmatprep.subr.mxu0 0.0
    %240 = vmatpush1.msra.mxu0 0.0
    %241 = vmatprep.subr.mxu0 0.0
    %242 = vmatpush1.msra.mxu0 0.0
    %243 = vmatprep.subr.mxu0 0.0
    %244 = vmatpush1.msra.mxu0 0.0
    %245 = vmatprep.subr.mxu0 0.0
    %246 = vmatpush1.msra.mxu0 0.0
    %247 = vmatprep.subr.mxu0 0.0
    %248 = vmatpush1.msra.mxu0 0.0
    %249 = vmatprep.subr.mxu0 0.0
    %250 = vmatpush1.msra.mxu0 0.0
    %251 = vmatprep.subr.mxu0 0.0
    %252 = vmatpush1.msra.mxu0 0.0
    %253 = vmatprep.subr.mxu0 0.0
    %254 = vmatpush1.msra.mxu0 0.0
    %255 = vmatprep.mubr.f32.mxu0 0.0
    %256 = vmatmul.mubr.f32.gmra.mrb[0].mxu0 %v167
    %v257 = vpop.f32.mrb[0].mxu0
    %v258 = vadd.f32 %v189, %v257
    %v259 = vpop.f32.mrb[0].mxu0
    %260 = vdwg.mxu0
    %v261 = vsub.f32 0.0, %v258
    %v262 = vmul.f32 %v261, 1.442695
    %v263 = vpow.pop %v262
    %v264 = vadd.f32 %v263, 1.0
    %v265 = vrcp.pop %v264
    %v266 = vmul.f32 1.0, %v265
    %v267 = vmul.f32 %v258, %v266
    %v268 = vld [vmem:[#allocation6] sm:$0xff]
    %v269 = vld [vmem:[#allocation6 + $0x8] sm:$0xff]
    %v270 = vld [vmem:[#allocation6 + $0x10] sm:$0xff]
    %v271 = vld [vmem:[#allocation6 + $0x18] sm:$0xff]
    %v272 = vld [vmem:[#allocation6 + $0x20] sm:$0xff]
    %v273 = vld [vmem:[#allocation6 + $0x28] sm:$0xff]
    %v274 = vld [vmem:[#allocation6 + $0x30] sm:$0xff]
    %v275 = vld [vmem:[#allocation6 + $0x38] sm:$0xff]
    %v276 = vld [vmem:[#allocation6 + $0x40] sm:$0xff]
    %v277 = vld [vmem:[#allocation6 + $0x48] sm:$0xff]
    %v278 = vld [vmem:[#allocation6 + $0x50] sm:$0xff]
    %v279 = vld [vmem:[#allocation6 + $0x58] sm:$0xff]
    %v280 = vld [vmem:[#allocation6 + $0x60] sm:$0xff]
    %v281 = vld [vmem:[#allocation6 + $0x68] sm:$0xff]
    %v282 = vld [vmem:[#allocation6 + $0x70] sm:$0xff]
    %v283 = vld [vmem:[#allocation6 + $0x78] sm:$0xff]
    %v284 = vld [vmem:[%s6] sm:$0x1]
    %v286 = vlaneseq
    %v287 = vshrl.u32 %v286, 7
    %v288 = vsub.s32 0, %v287
    %v289 = vrot.slane %v284, %v288
    %291 = vmatprep.subr.mxu0 0.0
    %292 = vmatpush1.msra.mxu0 %v268
    %293 = vmatprep.subr.mxu0 0.0
    %294 = vmatpush1.msra.mxu0 %v269
    %295 = vmatprep.subr.mxu0 0.0
    %296 = vmatpush1.msra.mxu0 %v270
    %297 = vmatprep.subr.mxu0 0.0
    %298 = vmatpush1.msra.mxu0 %v271
    %299 = vmatprep.subr.mxu0 0.0
    %300 = vmatpush1.msra.mxu0 %v272
    %301 = vmatprep.subr.mxu0 0.0
    %302 = vmatpush1.msra.mxu0 %v273
    %303 = vmatprep.subr.mxu0 0.0
    %304 = vmatpush1.msra.mxu0 %v274
    %305 = vmatprep.subr.mxu0 0.0
    %306 = vmatpush1.msra.mxu0 %v275
    %307 = vmatprep.subr.mxu0 0.0
    %308 = vmatpush1.msra.mxu0 %v276
    %309 = vmatprep.subr.mxu0 0.0
    %310 = vmatpush1.msra.mxu0 %v277
    %311 = vmatprep.subr.mxu0 0.0
    %312 = vmatpush1.msra.mxu0 %v278
    %313 = vmatprep.subr.mxu0 0.0
    %314 = vmatpush1.msra.mxu0 %v279
    %315 = vmatprep.subr.mxu0 0.0
    %316 = vmatpush1.msra.mxu0 %v280
    %317 = vmatprep.subr.mxu0 0.0
    %318 = vmatpush1.msra.mxu0 %v281
    %319 = vmatprep.subr.mxu0 0.0
    %320 = vmatpush1.msra.mxu0 %v282
    %321 = vmatprep.subr.mxu0 0.0
    %322 = vmatpush1.msra.mxu0 %v283
    %323 = vmatprep.subr.mxu0 0.0
    %324 = vmatpush1.msra.mxu0 0.0
    %325 = vmatprep.subr.mxu0 0.0
    %326 = vmatpush1.msra.mxu0 0.0
    %327 = vmatprep.subr.mxu0 0.0
    %328 = vmatpush1.msra.mxu0 0.0
    %329 = vmatprep.subr.mxu0 0.0
    %330 = vmatpush1.msra.mxu0 0.0
    %331 = vmatprep.subr.mxu0 0.0
    %332 = vmatpush1.msra.mxu0 0.0
    %333 = vmatprep.subr.mxu0 0.0
    %334 = vmatpush1.msra.mxu0 0.0
    %335 = vmatprep.subr.mxu0 0.0
    %336 = vmatpush1.msra.mxu0 0.0
    %337 = vmatprep.subr.mxu0 0.0
    %338 = vmatpush1.msra.mxu0 0.0
    %339 = vmatprep.subr.mxu0 0.0
    %340 = vmatpush1.msra.mxu0 0.0
    %341 = vmatprep.subr.mxu0 0.0
    %342 = vmatpush1.msra.mxu0 0.0
    %343 = vmatprep.subr.mxu0 0.0
    %344 = vmatpush1.msra.mxu0 0.0
    %345 = vmatprep.subr.mxu0 0.0
    %346 = vmatpush1.msra.mxu0 0.0
    %347 = vmatprep.subr.mxu0 0.0
    %348 = vmatpush1.msra.mxu0 0.0
    %349 = vmatprep.subr.mxu0 0.0
    %350 = vmatpush1.msra.mxu0 0.0
    %351 = vmatprep.subr.mxu0 0.0
    %352 = vmatpush1.msra.mxu0 0.0
    %353 = vmatprep.subr.mxu0 0.0
    %354 = vmatpush1.msra.mxu0 0.0
    %355 = vmatprep.mubr.f32.mxu0 0.0
    %356 = vmatmul.mubr.f32.gmra.mrb[0].mxu0 %v267
    %v357 = vpop.f32.mrb[0].mxu0
    %v358 = vadd.f32 %v289, %v357
    %v359 = vpop.f32.mrb[0].mxu0
    %360 = vdwg.mxu0
    %361 = vst [vmem:[%s7] sm:$0xff] %v358
    // Predicated region
    $region42: #{_subnet_forward_pallas.1} parent=1 // pred_check
      _
    $region43: #{_subnet_forward_pallas.1} parent=1 // pred_check_branch
      %363 = sbr.rel (0) target = $region45
    $region44: #{_subnet_forward_pallas.1} parent=1 // pred_region
      _
    $region45: #{_subnet_forward_pallas.1} parent=1 // pred_fallthru
      _
    // Predicated region
    $region46: #{_subnet_forward_pallas.1} parent=1 // pred_check
      _
    $region47: #{_subnet_forward_pallas.1} parent=1 // pred_check_branch
      %365 = sbr.rel (0) target = $region49
    $region48: #{_subnet_forward_pallas.1} parent=1 // pred_region
      _
    $region49: #{_subnet_forward_pallas.1} parent=1 // pred_fallthru
      _
    %366 = vsyncpa [#allocation3], 1
    %367 = vsyncpa [#allocation5], 1

</llo_original>
